<compile_context>
chip_gen: v6e
topology: v6e:2x2x1
jax: 0.10.0
libtpu: 0.0.40
codegen_flags: <defaults>
</compile_context>

<pallas_src>
import functools
import math

import jax
import jax.numpy as jnp
from jax.experimental import pallas as pl
from jax.experimental.pallas import tpu as pltpu

PAD, EOS, SOS, OOV = 0, 1, 2, 3  # Vocabulary constants

T_BLK = 16      # timesteps per grid step of the recurrent kernel
LANE = 128
SUBLANE = 8
V_ALIGN = 512   # vocab padded to a multiple of 512 -> 512-wide decode tiles


def _round_up(x, m):
    return ((x + m - 1) // m) * m


def _pick_tile(n, pref, step):
    """Largest tile <= pref (stepping by `step`) that divides n; n if n<=pref."""
    if n <= pref:
        return n
    t = pref
    while t >= step:
        if n % t == 0:
            return t
        t -= step
    return n


# ----------------------------------------------------------------------------
# shared GRU gate math (PyTorch nn.GRU gate order: r | z | n), gate width = H
# (H padded to a 128 multiple so the gate slices are lane-tile aligned)
# ----------------------------------------------------------------------------
def _gru_gates(gi, gh, h, H):
    r = jax.nn.sigmoid(gi[:, :H] + gh[:, :H])
    z = jax.nn.sigmoid(gi[:, H:2 * H] + gh[:, H:2 * H])
    n = jnp.tanh(gi[:, 2 * H:] + r * gh[:, 2 * H:])
    return (1.0 - z) * n + z * h


# ----------------------------------------------------------------------------
# Kernel 1: tiled Linear  (hoisted input projection AND hidden -> vocab
# decode).  grid = (M tiles, N tiles), both parallel.  Output dtype is
# selectable so intermediates can be emitted in bf16.
# ----------------------------------------------------------------------------
def _linear_kernel(x_ref, w_ref, b_ref, o_ref):
    w = w_ref[...]
    x = x_ref[...].astype(w.dtype)
    acc = jnp.dot(x, w, preferred_element_type=jnp.float32)
    o_ref[...] = (acc + b_ref[...].astype(jnp.float32)).astype(o_ref.dtype)


def linear(x, w, b, *, out_dtype=jnp.float32, tm=256, tn=512):
    M, K = x.shape
    K2, N = w.shape
    assert K == K2 and b.shape == (1, N)
    TM = _pick_tile(M, tm, SUBLANE)   # M is always a multiple of 8 here
    TN = _pick_tile(N, tn, LANE)      # N is always a multiple of 128 here
    return pl.pallas_call(
        _linear_kernel,
        grid=(M // TM, N // TN),
        in_specs=[
            pl.BlockSpec((TM, K), lambda i, j: (i, 0)),
            pl.BlockSpec((K, TN), lambda i, j: (0, j)),
            pl.BlockSpec((1, TN), lambda i, j: (0, j)),
        ],
        out_specs=pl.BlockSpec((TM, TN), lambda i, j: (i, j)),
        out_shape=jax.ShapeDtypeStruct((M, N), out_dtype),
        compiler_params=pltpu.CompilerParams(
            dimension_semantics=("parallel", "parallel")),
    )(x, w, b)


# ----------------------------------------------------------------------------
# Kernel 2: masked GRU recurrence over precomputed input projections.
# Emulates pack_padded_sequence / pad_packed_sequence:
#   - hidden only updates while t < length[b] (carried otherwise)
#   - emitted hidden sequence is 0 at padded timesteps
# gi_all = x @ W_ih + b_ih is precomputed for all timesteps (Kernel 1), so the
# per-step work is one (Bp,Hp)x(Hp,3Hp) matmul + gate elementwise.
# T_BLK timesteps are processed per grid step (unrolled fori_loop).
# ----------------------------------------------------------------------------
def _gru_seq_kernel(len_ref, gi_ref, h0_ref, whh_ref, bhh_ref,
                    hseq_ref, hlast_ref, *, t_blk, h_dim):
    blk = pl.program_id(0)

    @pl.when(blk == 0)
    def _():
        hlast_ref[...] = h0_ref[...]

    whh = whh_ref[...]
    bhh = bhh_ref[...].astype(jnp.float32)
    lens = len_ref[...]                                   # (Bp,1) int32 resident

    def step(i, h):
        t = blk * t_blk + i
        gi = gi_ref[i].astype(jnp.float32)                # (Bp, 3*Hp)
        gh = jnp.dot(h.astype(whh.dtype), whh,
                     preferred_element_type=jnp.float32) + bhh
        h_new = _gru_gates(gi, gh, h, h_dim)
        m = (t < lens).astype(jnp.float32)                # packed-sequence mask
        hseq_ref[i] = (m * h_new).astype(hseq_ref.dtype)  # pad_packed pads with 0
        return m * h_new + (1.0 - m) * h                  # carry past length

    hlast_ref[...] = jax.lax.fori_loop(0, t_blk, step, hlast_ref[...],
                                       unroll=True)


def gru_sequence(gi_all, lens_col, h0, whh, bhh, *, h_dim, t_blk=T_BLK,
                 seq_dtype=None):
    Lp, Bp, G = gi_all.shape
    Hp = h_dim
    seq_dtype = gi_all.dtype if seq_dtype is None else seq_dtype
    kernel = functools.partial(_gru_seq_kernel, t_blk=t_blk, h_dim=Hp)
    hseq, hlast = pl.pallas_call(
        kernel,
        grid=(Lp // t_blk,),
        in_specs=[
            pl.BlockSpec((Bp, 1), lambda t: (0, 0)),              # lengths
            pl.BlockSpec((t_blk, Bp, G), lambda t: (t, 0, 0)),
            pl.BlockSpec((Bp, Hp), lambda t: (0, 0)),
            pl.BlockSpec((Hp, G), lambda t: (0, 0)),
            pl.BlockSpec((1, G), lambda t: (0, 0)),
        ],
        out_specs=[
            pl.BlockSpec((t_blk, Bp, Hp), lambda t: (t, 0, 0)),
            pl.BlockSpec((Bp, Hp), lambda t: (0, 0)),
        ],
        out_shape=[
            jax.ShapeDtypeStruct((Lp, Bp, Hp), seq_dtype),
            jax.ShapeDtypeStruct((Bp, Hp), jnp.float32),
        ],
        compiler_params=pltpu.CompilerParams(
            dimension_semantics=("arbitrary",)),
    )(lens_col, gi_all, h0, whh, bhh)
    return hseq, hlast


# ----------------------------------------------------------------------------
# Kernel 3: Decoder.generate — greedy decoding inside one kernel.
# Per grid step t:
#   * (t==0) h_0 = GRU(embed(SOS), hn)
#   * stream decode(h_t) over static 512-lane vocab tiles: each tile is a
#     (Bp,Hp)x(Hp,TV) MXU matmul written straight to the lane-dense output
#     block and folded into a running (max, argmax) pair (no full-width
#     logits scratch / reductions),
#   * the all-EOS break is a sticky done flag; steps after it (and steps past
#     lenseq, passed via scalar prefetch) skip the GRU/decode and PAD(0.)-fill.
#
# NOTE (matches the PyTorch reference): the per-row `active` mask is
# recomputed from the *current* argmax only (it is NOT sticky per row) — the
# reference loop reassigns `active_mask = (top1 != EOS)` every iteration.
# Only the global all-EOS break is sticky.
#
# VMEM: with bf16 weights the resident set at production sizes (Vp=15360,
# Hp=384, Ep=256) is ~22 MiB, comfortably inside v7x's 64 MiB, so emb/wdec
# stay VMEM-resident (DMA'd once per call instead of re-streamed per token).
# If the model outgrows VMEM, switch wdec/emb to memory_space=pl.ANY and
# double-buffer (Hp, TV) tiles with pltpu.make_async_copy inside the tile
# loop below (already tiled for that).
# ----------------------------------------------------------------------------
def _generate_kernel(limit_ref, hn_ref, emb_ref, wih_ref, whh_ref, bih_ref,
                     bhh_ref, wdec_ref, bdec_ref, out_ref, h_s, done_s,
                     *, h_dim, v_real, b_real, tv):
    t = pl.program_id(0)
    limit = limit_ref[0]                         # actual lenseq (scalar prefetch)
    Bp, Hp = h_s.shape
    Vp = out_ref.shape[-1]
    n_tiles = Vp // tv

    def embed(tok_b1):                           # (Bp,1) int32 -> (Bp,Ep) f32
        # TODO(synk): replace the one-hot MXU matmul by a per-row DMA gather of
        # embedding rows once the token indices are available on the scalar
        # side; the one-hot keeps `emb` resident and is ~1/3 of per-step MXU.
        emb = emb_ref[...]
        vidx = jax.lax.broadcasted_iota(jnp.int32, (Bp, emb.shape[0]), 1)
        onehot = (vidx == tok_b1).astype(emb.dtype)
        return jnp.dot(onehot, emb, preferred_element_type=jnp.float32)

    def gru(x, h):
        wih = wih_ref[...]
        whh = whh_ref[...]
        gi = jnp.dot(x.astype(wih.dtype), wih,
                     preferred_element_type=jnp.float32) + \
            bih_ref[...].astype(jnp.float32)
        gh = jnp.dot(h.astype(whh.dtype), whh,
                     preferred_element_type=jnp.float32) + \
            bhh_ref[...].astype(jnp.float32)
        return _gru_gates(gi, gh, h, h_dim)

    @pl.when(t == 0)
    def _():
        done_s[0] = 0
        sos = jnp.full((Bp, 1), SOS, dtype=jnp.int32)
        h_s[...] = gru(embed(sos), hn_ref[...].astype(jnp.float32))

    live = jnp.logical_and(done_s[0] == 0, t < limit)

    @pl.when(live)
    def _():
        h = h_s[...]
        hw = h.astype(wdec_ref.dtype)
        rmax = jnp.full((Bp, 1), -jnp.inf, jnp.float32)
        rarg = jnp.zeros((Bp, 1), jnp.int32)
        for j in range(n_tiles):                 # static unroll: aligned slices
            lo = j * tv
            wt = wdec_ref[:, lo:lo + tv]                       # (Hp, TV)
            lt = (jnp.dot(hw, wt, preferred_element_type=jnp.float32)
                  + bdec_ref[:, lo:lo + tv].astype(jnp.float32))
            out_ref[0, :, lo:lo + tv] = lt                     # lane-dense store
            cols = lo + jax.lax.broadcasted_iota(jnp.int32, (Bp, tv), 1)
            masked = jnp.where(cols < v_real, lt, -jnp.inf)
            tmax = jnp.max(masked, axis=-1, keepdims=True)
            targ = jnp.min(jnp.where(masked == tmax, cols, jnp.int32(Vp)),
                           axis=-1, keepdims=True)
            rarg = jnp.where(tmax > rmax, targ, rarg)          # first-occurrence
            rmax = jnp.maximum(rmax, tmax)

        active = (rarg != EOS).astype(jnp.int32)               # (Bp,1) per-row
        real_rows = (jax.lax.broadcasted_iota(jnp.int32, (Bp, 1), 0)
                     < b_real).astype(jnp.int32)
        all_eos = jnp.sum(active * real_rows) == 0
        done_s[0] = all_eos.astype(jnp.int32)

        # only run the next GRU step if another (non-PAD) output is needed
        @pl.when(jnp.logical_and(t + 1 < limit, done_s[0] == 0))
        def _():
            next_tok = rarg * active                           # EOS rows feed PAD
            h_s[...] = gru(embed(next_tok), h)

    @pl.when(jnp.logical_not(live))
    def _():
        out_ref[...] = jnp.zeros_like(out_ref)                 # PAD(0.) fill


def gru_generate(hn_p, pp, *, lenseq, n_steps, v_real, b_real, tv=512):
    Bp, Hp = hn_p.shape
    Vp, Ep = pp["emb"].shape
    G = 3 * Hp
    TV = _pick_tile(Vp, tv, LANE)

    # explicit VMEM budget (feedback: defaults reject the kernel at real vocab)
    wbytes = jnp.dtype(pp["wdec"].dtype).itemsize
    est = ((Vp * Ep + Ep * G + Hp * G + Hp * Vp + 3 * G + Vp) * wbytes
           + Bp * Hp * 4            # hn
           + 2 * Bp * Vp * 4        # double-buffered output block
           + Bp * Hp * 4)           # h scratch
    vmem_limit = int(min(100 << 20, max(32 << 20, int(1.5 * est) + (2 << 20))))

    kernel = functools.partial(_generate_kernel, h_dim=Hp, v_real=v_real,
                               b_real=b_real, tv=TV)
    limit = jnp.array([lenseq], jnp.int32)
    return pl.pallas_call(
        kernel,
        grid_spec=pltpu.PrefetchScalarGridSpec(
            num_scalar_prefetch=1,
            grid=(n_steps,),
            in_specs=[
                pl.BlockSpec((Bp, Hp), lambda t, L: (0, 0)),
                pl.BlockSpec((Vp, Ep), lambda t, L: (0, 0)),
                pl.BlockSpec((Ep, G), lambda t, L: (0, 0)),
                pl.BlockSpec((Hp, G), lambda t, L: (0, 0)),
                pl.BlockSpec((1, G), lambda t, L: (0, 0)),
                pl.BlockSpec((1, G), lambda t, L: (0, 0)),
                pl.BlockSpec((Hp, Vp), lambda t, L: (0, 0)),
                pl.BlockSpec((1, Vp), lambda t, L: (0, 0)),
            ],
            out_specs=pl.BlockSpec((1, Bp, Vp), lambda t, L: (t, 0, 0)),
            scratch_shapes=[
                pltpu.VMEM((Bp, Hp), jnp.float32),   # h carry
                pltpu.SMEM((1,), jnp.int32),         # sticky all-EOS flag
            ]),
        out_shape=jax.ShapeDtypeStruct((n_steps, Bp, Vp), jnp.float32),
        compiler_params=pltpu.CompilerParams(
            dimension_semantics=("arbitrary",),
            vmem_limit_bytes=vmem_limit),
    )(limit, hn_p, pp["emb"], pp["wih"], pp["whh"], pp["bih"], pp["bhh"],
      pp["wdec"], pp["bdec"])


# ----------------------------------------------------------------------------
# parameter handling: unpadded logical params + padded kernel-layout params
# (gate columns padded per-gate so r|z|n boundaries stay lane-aligned;
#  default dtype bf16 — kernels accumulate in f32 on the MXU)
# ----------------------------------------------------------------------------
def init_params(key, vocab_des, E, H):
    ks = jax.random.split(key, 7)
    bound = 1.0 / math.sqrt(H)

    def u(k, shape):
        return jax.random.uniform(k, shape, jnp.float32, -bound, bound)

    emb = 0.1 * jax.random.normal(ks[0], (vocab_des, E), jnp.float32)
    return {
        "emb": emb.at[PAD].set(0.0),          # padding_idx = PAD
        "wih": u(ks[1], (E, 3 * H)),
        "whh": u(ks[2], (H, 3 * H)),
        "bih": u(ks[3], (3 * H,)),
        "bhh": u(ks[4], (3 * H,)),
        "wdec": u(ks[5], (H, vocab_des)),
        "bdec": u(ks[6], (vocab_des,)),
    }


def pad_params(params, *, H, Hp, V, Vp, E, Ep, dtype=jnp.bfloat16):
    def pad_gate_cols(w):                       # (..., 3H) -> (..., 3Hp)
        lead = w.shape[:-1]
        w3 = w.reshape(lead + (3, H))
        w3 = jnp.pad(w3, [(0, 0)] * len(lead) + [(0, 0), (0, Hp - H)])
        return w3.reshape(lead + (3 * Hp,))

    pp = {
        "emb": jnp.pad(params["emb"], ((0, Vp - V), (0, Ep - E))),
        "wih": jnp.pad(pad_gate_cols(params["wih"]), ((0, Ep - E), (0, 0))),
        "whh": jnp.pad(pad_gate_cols(params["whh"]), ((0, Hp - H), (0, 0))),
        "bih": pad_gate_cols(params["bih"][None, :]),
        "bhh": pad_gate_cols(params["bhh"][None, :]),
        "wdec": jnp.pad(params["wdec"], ((0, Hp - H), (0, Vp - V))),
        "bdec": jnp.pad(params["bdec"], (0, Vp - V))[None, :],
    }
    return {k: v.astype(dtype) for k, v in pp.items()}


# ----------------------------------------------------------------------------
# Decoder.forward (teacher forcing) and Decoder.generate (greedy)
# ----------------------------------------------------------------------------
def decoder_forward(params, padded, sentences, lengths, hn):
    """sentences: (Ld,B) int32, lengths: (B,), hn: (B,H) — returns (Ld,B,V)."""
    Ld, B = sentences.shape
    H = hn.shape[1]
    V = params["wdec"].shape[1]
    Hp = padded["whh"].shape[0]
    Vp = padded["wdec"].shape[1]
    Ep = padded["emb"].shape[1]
    Bp = _round_up(B, SUBLANE)
    L = Ld + 1
    Lp = _round_up(L, T_BLK)

    sos = jnp.full((1, B), SOS, dtype=sentences.dtype)
    sent = jnp.concatenate([sos, sentences], axis=0)              # (L,B)
    lens = lengths.astype(jnp.int32) + 1                          # (B,)

    x = padded["emb"][sent]                                       # (L,B,Ep)
    x = jnp.pad(x, ((0, Lp - L), (0, Bp - B), (0, 0)))
    lens_col = jnp.pad(lens, (0, Bp - B))[:, None]                # (Bp,1)
    hn_p = jnp.pad(hn, ((0, Bp - B), (0, Hp - H))).astype(jnp.float32)

    # hoisted input projection: one big MXU matmul for all timesteps
    # (emitted in the weight dtype, e.g. bf16, to halve the HBM round-trip)
    gi_all = linear(x.reshape(Lp * Bp, Ep), padded["wih"], padded["bih"],
                    out_dtype=padded["wih"].dtype)
    gi_all = gi_all.reshape(Lp, Bp, 3 * Hp)

    hseq, _ = gru_sequence(gi_all, lens_col, hn_p,
                           padded["whh"], padded["bhh"], h_dim=Hp,
                           seq_dtype=padded["whh"].dtype)

    h_in = hseq[:Ld].reshape(Ld * Bp, Hp)                         # hiddens[:-1]
    logits = linear(h_in, padded["wdec"], padded["bdec"],
                    out_dtype=jnp.float32)
    return logits.reshape(Ld, Bp, Vp)[:, :B, :V]


def decoder_generate(params, padded, hn, lenseq, max_len=None):
    """hn: (B,H).  `max_len` fixes the kernel grid (serving: avoids recompiles
    for varying lenseq); the actual lenseq is passed via scalar prefetch."""
    B, H = hn.shape
    V = params["wdec"].shape[1]
    Hp = padded["whh"].shape[0]
    Bp = _round_up(B, SUBLANE)
    lenseq = int(lenseq)
    n_steps = int(max_len) if max_len is not None else lenseq
    assert 1 <= lenseq <= n_steps
    hn_p = jnp.pad(hn, ((0, Bp - B), (0, Hp - H))).astype(jnp.float32)
    out = gru_generate(hn_p, padded, lenseq=lenseq, n_steps=n_steps,
                       v_real=V, b_real=B)
    return out[:lenseq, :B, :V]


# ----------------------------------------------------------------------------
# pure-JAX references (unpadded, fp32) for correctness checking
# ----------------------------------------------------------------------------
def _ref_gru_cell(params, x, h):
    H = h.shape[1]
    gi = x @ params["wih"] + params["bih"]
    gh = h @ params["whh"] + params["bhh"]
    r = jax.nn.sigmoid(gi[:, :H] + gh[:, :H])
    z = jax.nn.sigmoid(gi[:, H:2 * H] + gh[:, H:2 * H])
    n = jnp.tanh(gi[:, 2 * H:] + r * gh[:, 2 * H:])
    return (1.0 - z) * n + z * h


def _ref_forward(params, sentences, lengths, hn):
    Ld, B = sentences.shape
    sos = jnp.full((1, B), SOS, dtype=sentences.dtype)
    sent = jnp.concatenate([sos, sentences], axis=0)
    lens = lengths + 1
    x = params["emb"][sent]
    mask = (jnp.arange(Ld + 1)[:, None] < lens[None, :]
            ).astype(jnp.float32)[..., None]

    def step(h, xm):
        xt, mt = xm
        h_new = _ref_gru_cell(params, xt, h)
        return mt * h_new + (1.0 - mt) * h, mt * h_new

    _, hseq = jax.lax.scan(step, hn, (x, mask))
    return hseq[:-1] @ params["wdec"] + params["bdec"]


def _ref_generate_first_logits(params, hn):
    B = hn.shape[0]
    tok = jnp.full((B,), SOS, jnp.int32)
    h = _ref_gru_cell(params, params["emb"][tok], hn)
    return h @ params["wdec"] + params["bdec"]


if __name__ == "__main__":
    VOCAB_DES = 520                 # -> Vp=1024: exercises 2 vocab tiles
    EMBED_DIM, HIDDEN_DIM = 32, 32  # small stand-ins for 200 / 300
    B, Ld = 4, 6

    key = jax.random.PRNGKey(0)
    kp, kh, kd = jax.random.split(key, 3)
    params = init_params(kp, VOCAB_DES, EMBED_DIM, HIDDEN_DIM)

    Hp = _round_up(HIDDEN_DIM, LANE)
    Vp = _round_up(VOCAB_DES, V_ALIGN)
    Ep = _round_up(EMBED_DIM, LANE)

    len_des = jnp.array([6, 5, 4, 2], jnp.int32)
    des = jax.random.randint(kd, (Ld, B), 4, VOCAB_DES, jnp.int32)
    des = jnp.where(jnp.arange(Ld)[:, None] < len_des[None, :], des, PAD)
    hn = 0.1 * jax.random.normal(kh, (B, HIDDEN_DIM), jnp.float32)
    lenseq = int(jnp.max(len_des))

    ref_tf = _ref_forward(params, des, len_des, hn)
    ref_gen0 = _ref_generate_first_logits(params, hn)

    # --- fp32 path: exact check against the pure-JAX reference ---------------
    padded32 = pad_params(params, H=HIDDEN_DIM, Hp=Hp, V=VOCAB_DES, Vp=Vp,
                          E=EMBED_DIM, Ep=Ep, dtype=jnp.float32)
    out_tf = decoder_forward(params, padded32, des, len_des, hn)
    out_gen = decoder_generate(params, padded32, hn, lenseq,
                               max_len=lenseq + 2)   # fixed-grid serving mode
    jax.block_until_ready((out_tf, out_gen))

    assert out_tf.shape == (Ld, B, VOCAB_DES), out_tf.shape
    err_tf = float(jnp.max(jnp.abs(out_tf - ref_tf)))
    assert err_tf < 2e-4, err_tf

    assert out_gen.shape == (lenseq, B, VOCAB_DES), out_gen.shape
    assert bool(jnp.all(jnp.isfinite(out_gen)))
    err_gen0 = float(jnp.max(jnp.abs(out_gen[0] - ref_gen0)))
    assert err_gen0 < 2e-4, err_gen0

    # --- bf16 path (production default): loose numerical check ---------------
    padded16 = pad_params(params, H=HIDDEN_DIM, Hp=Hp, V=VOCAB_DES, Vp=Vp,
                          E=EMBED_DIM, Ep=Ep, dtype=jnp.bfloat16)
    out_tf16 = decoder_forward(params, padded16, des, len_des, hn)
    out_gen16 = decoder_generate(params, padded16, hn, lenseq)
    jax.block_until_ready((out_tf16, out_gen16))

    assert out_tf16.shape == (Ld, B, VOCAB_DES)
    assert out_gen16.shape == (lenseq, B, VOCAB_DES)
    assert bool(jnp.all(jnp.isfinite(out_tf16)))
    assert bool(jnp.all(jnp.isfinite(out_gen16)))
    assert float(jnp.max(jnp.abs(out_tf16 - ref_tf))) < 1e-1
    assert float(jnp.max(jnp.abs(out_gen16[0] - ref_gen0))) < 1e-1

    print("KERNEL_OK")
</pallas_src>

<mosaic_0001>
module attributes {stable_mosaic.version = 11 : i64} {
  func.func @_linear_kernel(%arg0: i32, %arg1: i32, %arg2: memref<128x128xf32, #tpu.memory_space<vmem>>, %arg3: memref<128x384xf32, #tpu.memory_space<vmem>>, %arg4: memref<1x384xf32, #tpu.memory_space<vmem>>, %arg5: memref<128x384xf32, #tpu.memory_space<vmem>>) attributes {dimension_semantics = [#tpu.dimension_semantics<parallel>, #tpu.dimension_semantics<parallel>], iteration_bounds = array<i64: 1, 1>, scalar_prefetch = 0 : i64, scratch_operands = 0 : i64, tpu.core_type = #tpu.core_type<tc>, window_params = [{transform_indices = @transform_0, window_bounds = array<i64: 128, 128>}, {transform_indices = @transform_1, window_bounds = array<i64: 128, 384>}, {transform_indices = @transform_2, window_bounds = array<i64: 1, 384>}, {transform_indices = @transform_3, window_bounds = array<i64: 128, 384>}]} {
    %c0 = arith.constant 0 : index
    %c0_0 = arith.constant 0 : index
    %0 = vector.load %arg3[%c0, %c0_0] : memref<128x384xf32, #tpu.memory_space<vmem>>, vector<128x384xf32>
    %c0_1 = arith.constant 0 : index
    %c0_2 = arith.constant 0 : index
    %1 = vector.load %arg2[%c0_1, %c0_2] : memref<128x128xf32, #tpu.memory_space<vmem>>, vector<128x128xf32>
    %cst = arith.constant dense<0.000000e+00> : vector<128x384xf32>
    %2 = tpu.matmul %1, %0, %cst {dimension_numbers = #tpu.dot_dimension_numbers<[1], [0], [0], [1], [0, 0, 1, 1], [], []>} : vector<128x128xf32>, vector<128x384xf32>, vector<128x384xf32> -> vector<128x384xf32>
    %c0_3 = arith.constant 0 : index
    %c0_4 = arith.constant 0 : index
    %3 = vector.load %arg4[%c0_3, %c0_4] : memref<1x384xf32, #tpu.memory_space<vmem>>, vector<1x384xf32>
    %4 = vector.broadcast %3 : vector<1x384xf32> to vector<128x384xf32>
    %5 = arith.addf %2, %4 : vector<128x384xf32>
    %c0_5 = arith.constant 0 : index
    %c0_6 = arith.constant 0 : index
    %6 = vector.load %arg5[%c0_5, %c0_6] : memref<128x384xf32, #tpu.memory_space<vmem>>, vector<128x384xf32>
    tpu.vector_store %arg5[%c0_5, %c0_6], %5 {strides = array<i32>} : memref<128x384xf32, #tpu.memory_space<vmem>>, vector<128x384xf32>,
    return
  }
  func.func @transform_0(%arg0: i32, %arg1: i32) -> (i32, i32) {
    %c0_i32 = arith.constant 0 : i32
    %c0_i32_0 = arith.constant 0 : i32
    return %arg0, %c0_i32 : i32, i32
  }
  func.func @transform_1(%arg0: i32, %arg1: i32) -> (i32, i32) {
    %c0_i32 = arith.constant 0 : i32
    %c0_i32_0 = arith.constant 0 : i32
    return %c0_i32, %arg1 : i32, i32
  }
  func.func @transform_2(%arg0: i32, %arg1: i32) -> (i32, i32) {
    %c0_i32 = arith.constant 0 : i32
    %c0_i32_0 = arith.constant 0 : i32
    return %c0_i32, %arg1 : i32, i32
  }
  func.func @transform_3(%arg0: i32, %arg1: i32) -> (i32, i32) {
    %c0_i32 = arith.constant 0 : i32
    return %arg0, %arg1 : i32, i32
  }
}

</mosaic_0001>

<llo_original>
// kernel: tpu_custom_call.1
$region0: #{tpu_custom_call.1}
  #allocation0 [shape = 'u32[]', space=smem, size = 0x4, offset = 0x4, fixed_abs, tag = 'smem constant byte address 0x4 - core index']
  #allocation1 [shape = 'u32[144,128]{1,0:T(1,128)}', space=vmem, size = 0x12000, scoped, tag = 'internal scratch']
  %s0 = inlined_call_operand.hbm [shape: f32[128,128], index: 0, kind: input, shape index: {}]
  %s1 = inlined_call_operand.hbm [shape: f32[128,384], index: 1, kind: input, shape index: {}]
  %s2 = inlined_call_operand.vmem [shape: f32[1,384], index: 2, kind: input, shape index: {}]
  %s3 = inlined_call_operand.hbm [shape: f32[128,384], index: 3, kind: output, shape index: {}]
  %s4 = sld [smem:[#allocation0]]
  $region30: #{tpu_custom_call.1} parent=0
    _
  %s6 = ssub.s32 1, %s4
  %s7 = scalar_select 0, %s6, %s4
  $region1: #{tpu_custom_call.1} parent=0
    #allocation2 [shape = 'u8[65536]{0}', space=vmem, size = 0x10000, scoped, tag = 'input window, operand 0, single buffered']
    #allocation3 [shape = 's32[1]{0}', space=sflag, size = 0x4, scoped, tag = 'scoped memory for tpu_custom_call.1']
    #allocation4 [shape = 's32[1]{0}', space=sflag, size = 0x4, scoped, tag = 'scoped memory for tpu_custom_call.1']
    #allocation5 [shape = 'u8[196608]{0}', space=vmem, size = 0x30000, scoped, tag = 'input window, operand 1, single buffered']
    #allocation6 [shape = 's32[1]{0}', space=sflag, size = 0x4, scoped, tag = 'scoped memory for tpu_custom_call.1']
    #allocation7 [shape = 'u8[196608]{0}', space=vmem, size = 0x30000, scoped, tag = 'output window, operand 0, single buffered']
    %8 = vsyncpa [#allocation3], 0
    %9 = vsyncpa [#allocation6], 0
    %10 = vsyncpa [#allocation4], 0
    // Predicated region
    $region2: #{tpu_custom_call.1} parent=1 // pred_check
      _
    $region3: #{tpu_custom_call.1} parent=1 // pred_check_branch
      %12 = sbr.rel (0) target = $region5
    $region4: #{tpu_custom_call.1} parent=1 // pred_region
      %s14 = ssub.s32 2048, 2048
      %15 = vsyncadd [#allocation3], %s14
      %s16 = sshll.u32 [#allocation2], 4
      %s17 = int_to_ptr.vmem [resolvable:$true] %s16
      %22 = dma.hbm_to_vmem [thread:$0]  %s0, 2048, %s17, [#allocation3], 128, 128, 8
    $region5: #{tpu_custom_call.1} parent=1 // pred_fallthru
      _
    // Predicated region
    $region6: #{tpu_custom_call.1} parent=1 // pred_check
      _
    $region7: #{tpu_custom_call.1} parent=1 // pred_check_branch
      %24 = sbr.rel (0) target = $region9
    $region8: #{tpu_custom_call.1} parent=1 // pred_region
      %s26 = ssub.s32 6144, 6144
      %27 = vsyncadd [#allocation6], %s26
      %s28 = sshll.u32 [#allocation5], 4
      %s29 = int_to_ptr.vmem [resolvable:$true] %s28
      %34 = dma.hbm_to_vmem [thread:$0]  %s1, 6144, %s29, [#allocation6], 384, 384, 24
    $region9: #{tpu_custom_call.1} parent=1 // pred_fallthru
      _
    // Predicated region
    $region10: #{tpu_custom_call.1} parent=1 // pred_check
      _
    $region11: #{tpu_custom_call.1} parent=1 // pred_check_branch
      %36 = sbr.rel (0) target = $region13
    $region12: #{tpu_custom_call.1} parent=1 // pred_region
      _
    $region13: #{tpu_custom_call.1} parent=1 // pred_fallthru
      _
    // Predicated region
    $region14: #{tpu_custom_call.1} parent=1 // pred_check
      _
    $region15: #{tpu_custom_call.1} parent=1 // pred_check_branch
      %38 = sbr.rel (0) target = $region17
    $region16: #{tpu_custom_call.1} parent=1 // pred_region
      %39 = dma.done [#allocation3], 2048
    $region17: #{tpu_custom_call.1} parent=1 // pred_fallthru
      _
    // Predicated region
    $region18: #{tpu_custom_call.1} parent=1 // pred_check
      _
    $region19: #{tpu_custom_call.1} parent=1 // pred_check_branch
      %41 = sbr.rel (0) target = $region21
    $region20: #{tpu_custom_call.1} parent=1 // pred_region
      %42 = dma.done [#allocation6], 6144
    $region21: #{tpu_custom_call.1} parent=1 // pred_fallthru
      _
    %v43 = vld [vmem:[#allocation5] sm:$0xff]
    %v44 = vld [vmem:[#allocation5 + $0x8] sm:$0xff]
    %v45 = vld [vmem:[#allocation5 + $0x10] sm:$0xff]
    %v46 = vld [vmem:[#allocation5 + $0x18] sm:$0xff]
    %v47 = vld [vmem:[#allocation5 + $0x20] sm:$0xff]
    %v48 = vld [vmem:[#allocation5 + $0x28] sm:$0xff]
    %v49 = vld [vmem:[#allocation5 + $0x30] sm:$0xff]
    %v50 = vld [vmem:[#allocation5 + $0x38] sm:$0xff]
    %v51 = vld [vmem:[#allocation5 + $0x40] sm:$0xff]
    %v52 = vld [vmem:[#allocation5 + $0x48] sm:$0xff]
    %v53 = vld [vmem:[#allocation5 + $0x50] sm:$0xff]
    %v54 = vld [vmem:[#allocation5 + $0x58] sm:$0xff]
    %v55 = vld [vmem:[#allocation5 + $0x60] sm:$0xff]
    %v56 = vld [vmem:[#allocation5 + $0x68] sm:$0xff]
    %v57 = vld [vmem:[#allocation5 + $0x70] sm:$0xff]
    %v58 = vld [vmem:[#allocation5 + $0x78] sm:$0xff]
    %v59 = vld [vmem:[#allocation5 + $0x80] sm:$0xff]
    %v60 = vld [vmem:[#allocation5 + $0x88] sm:$0xff]
    %v61 = vld [vmem:[#allocation5 + $0x90] sm:$0xff]
    %v62 = vld [vmem:[#allocation5 + $0x98] sm:$0xff]
    %v63 = vld [vmem:[#allocation5 + $0xa0] sm:$0xff]
    %v64 = vld [vmem:[#allocation5 + $0xa8] sm:$0xff]
    %v65 = vld [vmem:[#allocation5 + $0xb0] sm:$0xff]
    %v66 = vld [vmem:[#allocation5 + $0xb8] sm:$0xff]
    %v67 = vld [vmem:[#allocation5 + $0xc0] sm:$0xff]
    %v68 = vld [vmem:[#allocation5 + $0xc8] sm:$0xff]
    %v69 = vld [vmem:[#allocation5 + $0xd0] sm:$0xff]
    %v70 = vld [vmem:[#allocation5 + $0xd8] sm:$0xff]
    %v71 = vld [vmem:[#allocation5 + $0xe0] sm:$0xff]
    %v72 = vld [vmem:[#allocation5 + $0xe8] sm:$0xff]
    %v73 = vld [vmem:[#allocation5 + $0xf0] sm:$0xff]
    %v74 = vld [vmem:[#allocation5 + $0xf8] sm:$0xff]
    %v75 = vld [vmem:[#allocation5 + $0x100] sm:$0xff]
    %v76 = vld [vmem:[#allocation5 + $0x108] sm:$0xff]
    %v77 = vld [vmem:[#allocation5 + $0x110] sm:$0xff]
    %v78 = vld [vmem:[#allocation5 + $0x118] sm:$0xff]
    %v79 = vld [vmem:[#allocation5 + $0x120] sm:$0xff]
    %v80 = vld [vmem:[#allocation5 + $0x128] sm:$0xff]
    %v81 = vld [vmem:[#allocation5 + $0x130] sm:$0xff]
    %v82 = vld [vmem:[#allocation5 + $0x138] sm:$0xff]
    %v83 = vld [vmem:[#allocation5 + $0x140] sm:$0xff]
    %v84 = vld [vmem:[#allocation5 + $0x148] sm:$0xff]
    %v85 = vld [vmem:[#allocation5 + $0x150] sm:$0xff]
    %v86 = vld [vmem:[#allocation5 + $0x158] sm:$0xff]
    %v87 = vld [vmem:[#allocation5 + $0x160] sm:$0xff]
    %v88 = vld [vmem:[#allocation5 + $0x168] sm:$0xff]
    %v89 = vld [vmem:[#allocation5 + $0x170] sm:$0xff]
    %v90 = vld [vmem:[#allocation5 + $0x178] sm:$0xff]
    %v91 = vld [vmem:[#allocation2] sm:$0xff]
    %v92 = vld [vmem:[#allocation2 + $0x8] sm:$0xff]
    %v93 = vld [vmem:[#allocation2 + $0x10] sm:$0xff]
    %v94 = vld [vmem:[#allocation2 + $0x18] sm:$0xff]
    %v95 = vld [vmem:[#allocation2 + $0x20] sm:$0xff]
    %v96 = vld [vmem:[#allocation2 + $0x28] sm:$0xff]
    %v97 = vld [vmem:[#allocation2 + $0x30] sm:$0xff]
    %v98 = vld [vmem:[#allocation2 + $0x38] sm:$0xff]
    %v99 = vld [vmem:[#allocation2 + $0x40] sm:$0xff]
    %v100 = vld [vmem:[#allocation2 + $0x48] sm:$0xff]
    %v101 = vld [vmem:[#allocation2 + $0x50] sm:$0xff]
    %v102 = vld [vmem:[#allocation2 + $0x58] sm:$0xff]
    %v103 = vld [vmem:[#allocation2 + $0x60] sm:$0xff]
    %v104 = vld [vmem:[#allocation2 + $0x68] sm:$0xff]
    %v105 = vld [vmem:[#allocation2 + $0x70] sm:$0xff]
    %v106 = vld [vmem:[#allocation2 + $0x78] sm:$0xff]
    %v107 = vld [vmem:[%s2] sm:$0x7]
    %v109 = vlaneseq
    %v110 = vshrl.u32 %v109, 7
    %v111 = vsub.s32 0, %v110
    %v112 = vrot.slane %v107, %v111
    %v113 = vlaneseq
    %v114 = vshrl.u32 %v113, 7
    %v115 = vsub.s32 1, %v114
    %v116 = vrot.slane %v107, %v115
    %v117 = vlaneseq
    %v118 = vshrl.u32 %v117, 7
    %v119 = vsub.s32 2, %v118
    %v120 = vrot.slane %v107, %v119
    %124 = vmatprep.subr.mxu0 %v89
    %125 = vmatpush1.msra.mxu0 %v88
    %126 = vmatprep.subr.mxu0 %v86
    %127 = vmatpush1.msra.mxu0 %v85
    %128 = vmatprep.subr.mxu0 %v83
    %129 = vmatpush1.msra.mxu0 %v82
    %130 = vmatprep.subr.mxu0 %v80
    %131 = vmatpush1.msra.mxu0 %v79
    %132 = vmatprep.subr.mxu0 %v77
    %133 = vmatpush1.msra.mxu0 %v76
    %134 = vmatprep.subr.mxu0 %v74
    %135 = vmatpush1.msra.mxu0 %v73
    %136 = vmatprep.subr.mxu0 %v71
    %137 = vmatpush1.msra.mxu0 %v70
    %138 = vmatprep.subr.mxu0 %v68
    %139 = vmatpush1.msra.mxu0 %v67
    %140 = vmatprep.subr.mxu0 %v65
    %141 = vmatpush1.msra.mxu0 %v64
    %142 = vmatprep.subr.mxu0 %v62
    %143 = vmatpush1.msra.mxu0 %v61
    %144 = vmatprep.subr.mxu0 %v59
    %145 = vmatpush1.msra.mxu0 %v58
    %146 = vmatprep.subr.mxu0 %v56
    %147 = vmatpush1.msra.mxu0 %v55
    %148 = vmatprep.subr.mxu0 %v53
    %149 = vmatpush1.msra.mxu0 %v52
    %150 = vmatprep.subr.mxu0 %v50
    %151 = vmatpush1.msra.mxu0 %v49
    %152 = vmatprep.subr.mxu0 %v47
    %153 = vmatpush1.msra.mxu0 %v46
    %154 = vmatprep.subr.mxu0 %v44
    %155 = vmatpush1.msra.mxu0 %v43
    %156 = vmatprep.subr.mxu0 0.0
    %157 = vmatpush2.msra.mxu0 0.0
    %158 = vmatprep.subr.mxu0 0.0
    %159 = vmatpush2.msra.mxu0 0.0
    %160 = vmatprep.subr.mxu0 0.0
    %161 = vmatpush2.msra.mxu0 0.0
    %162 = vmatprep.subr.mxu0 0.0
    %163 = vmatpush2.msra.mxu0 0.0
    %164 = vmatprep.subr.mxu0 0.0
    %165 = vmatpush2.msra.mxu0 0.0
    %166 = vmatprep.subr.mxu0 0.0
    %167 = vmatpush2.msra.mxu0 0.0
    %168 = vmatprep.subr.mxu0 0.0
    %169 = vmatpush2.msra.mxu0 0.0
    %170 = vmatprep.subr.mxu0 0.0
    %171 = vmatpush2.msra.mxu0 0.0
    %172 = vmatprep.subr.mxu0 0.0
    %173 = vmatpush2.msra.mxu0 0.0
    %174 = vmatprep.subr.mxu0 0.0
    %175 = vmatpush2.msra.mxu0 0.0
    %176 = vmatprep.subr.mxu0 0.0
    %177 = vmatpush2.msra.mxu0 0.0
    %178 = vmatprep.subr.mxu0 0.0
    %179 = vmatpush2.msra.mxu0 0.0
    %180 = vmatprep.subr.mxu0 0.0
    %181 = vmatpush2.msra.mxu0 0.0
    %182 = vmatprep.subr.mxu0 0.0
    %183 = vmatpush2.msra.mxu0 0.0
    %184 = vmatprep.subr.mxu0 0.0
    %185 = vmatpush2.msra.mxu0 0.0
    %186 = vmatprep.subr.mxu0 0.0
    %187 = vmatpush2.msra.mxu0 0.0
    %188 = vmatprep.mubr.f32.mxu0 0.0
    %189 = vmatmul.mubr.f32.gmra.mxu0 %v91
    %v190 = vpop.f32.mrf.mxu0
    %v191 = vadd.f32 %v112, %v190
    %v192 = vpop.f32.mrf.mxu0
    %v193 = vadd.f32 %v116, %v192
    %194 = vmatprep.mubr.f32.mxu0 0.0
    %195 = vmatmul.mubr.f32.gmra.mxu0 %v92
    %v196 = vpop.f32.mrf.mxu0
    %v197 = vadd.f32 %v112, %v196
    %v198 = vpop.f32.mrf.mxu0
    %v199 = vadd.f32 %v116, %v198
    %200 = vmatprep.mubr.f32.mxu0 0.0
    %201 = vmatmul.mubr.f32.gmra.mxu0 %v93
    %v202 = vpop.f32.mrf.mxu0
    %v203 = vadd.f32 %v112, %v202
    %v204 = vpop.f32.mrf.mxu0
    %v205 = vadd.f32 %v116, %v204
    %206 = vmatprep.mubr.f32.mxu0 0.0
    %207 = vmatmul.mubr.f32.gmra.mxu0 %v94
    %v208 = vpop.f32.mrf.mxu0
    %v209 = vadd.f32 %v112, %v208
    %v210 = vpop.f32.mrf.mxu0
    %v211 = vadd.f32 %v116, %v210
    %212 = vmatprep.mubr.f32.mxu0 0.0
    %213 = vmatmul.mubr.f32.gmra.mxu0 %v95
    %v214 = vpop.f32.mrf.mxu0
    %v215 = vadd.f32 %v112, %v214
    %v216 = vpop.f32.mrf.mxu0
    %v217 = vadd.f32 %v116, %v216
    %218 = vmatprep.mubr.f32.mxu0 0.0
    %219 = vmatmul.mubr.f32.gmra.mxu0 %v96
    %v220 = vpop.f32.mrf.mxu0
    %v221 = vadd.f32 %v112, %v220
    %v222 = vpop.f32.mrf.mxu0
    %v223 = vadd.f32 %v116, %v222
    %224 = vmatprep.mubr.f32.mxu0 0.0
    %225 = vmatmul.mubr.f32.gmra.mxu0 %v97
    %v226 = vpop.f32.mrf.mxu0
    %v227 = vadd.f32 %v112, %v226
    %v228 = vpop.f32.mrf.mxu0
    %v229 = vadd.f32 %v116, %v228
    %230 = vmatprep.mubr.f32.mxu0 0.0
    %231 = vmatmul.mubr.f32.gmra.mxu0 %v98
    %v232 = vpop.f32.mrf.mxu0
    %v233 = vadd.f32 %v112, %v232
    %v234 = vpop.f32.mrf.mxu0
    %v235 = vadd.f32 %v116, %v234
    %236 = vmatprep.mubr.f32.mxu0 0.0
    %237 = vmatmul.mubr.f32.gmra.mxu0 %v99
    %v238 = vpop.f32.mrf.mxu0
    %v239 = vadd.f32 %v112, %v238
    %v240 = vpop.f32.mrf.mxu0
    %v241 = vadd.f32 %v116, %v240
    %242 = vmatprep.mubr.f32.mxu0 0.0
    %243 = vmatmul.mubr.f32.gmra.mxu0 %v100
    %v244 = vpop.f32.mrf.mxu0
    %v245 = vadd.f32 %v112, %v244
    %v246 = vpop.f32.mrf.mxu0
    %v247 = vadd.f32 %v116, %v246
    %248 = vmatprep.mubr.f32.mxu0 0.0
    %249 = vmatmul.mubr.f32.gmra.mxu0 %v101
    %v250 = vpop.f32.mrf.mxu0
    %v251 = vadd.f32 %v112, %v250
    %v252 = vpop.f32.mrf.mxu0
    %v253 = vadd.f32 %v116, %v252
    %254 = vmatprep.mubr.f32.mxu0 0.0
    %255 = vmatmul.mubr.f32.gmra.mxu0 %v102
    %v256 = vpop.f32.mrf.mxu0
    %v257 = vadd.f32 %v112, %v256
    %v258 = vpop.f32.mrf.mxu0
    %v259 = vadd.f32 %v116, %v258
    %260 = vmatprep.mubr.f32.mxu0 0.0
    %261 = vmatmul.mubr.f32.gmra.mxu0 %v103
    %v262 = vpop.f32.mrf.mxu0
    %v263 = vadd.f32 %v112, %v262
    %v264 = vpop.f32.mrf.mxu0
    %v265 = vadd.f32 %v116, %v264
    %266 = vmatprep.mubr.f32.mxu0 0.0
    %267 = vmatmul.mubr.f32.gmra.mxu0 %v104
    %v268 = vpop.f32.mrf.mxu0
    %v269 = vadd.f32 %v112, %v268
    %v270 = vpop.f32.mrf.mxu0
    %v271 = vadd.f32 %v116, %v270
    %272 = vmatprep.mubr.f32.mxu0 0.0
    %273 = vmatmul.mubr.f32.gmra.mxu0 %v105
    %v274 = vpop.f32.mrf.mxu0
    %v275 = vadd.f32 %v112, %v274
    %v276 = vpop.f32.mrf.mxu0
    %v277 = vadd.f32 %v116, %v276
    %278 = vmatprep.mubr.f32.mxu0 0.0
    %279 = vmatmul.mubr.f32.gmra.mxu0 %v106
    %v280 = vpop.f32.mrf.mxu0
    %v281 = vadd.f32 %v112, %v280
    %v282 = vpop.f32.mrf.mxu0
    %v283 = vadd.f32 %v116, %v282
    %284 = vdwg.mxu0
    %285 = vmatprep.subr.mxu0 0.0
    %286 = vmatpush1.msra.mxu0 %v90
    %287 = vmatprep.subr.mxu0 0.0
    %288 = vmatpush1.msra.mxu0 %v87
    %289 = vmatprep.subr.mxu0 0.0
    %290 = vmatpush1.msra.mxu0 %v84
    %291 = vmatprep.subr.mxu0 0.0
    %292 = vmatpush1.msra.mxu0 %v81
    %293 = vmatprep.subr.mxu0 0.0
    %294 = vmatpush1.msra.mxu0 %v78
    %295 = vmatprep.subr.mxu0 0.0
    %296 = vmatpush1.msra.mxu0 %v75
    %297 = vmatprep.subr.mxu0 0.0
    %298 = vmatpush1.msra.mxu0 %v72
    %299 = vmatprep.subr.mxu0 0.0
    %300 = vmatpush1.msra.mxu0 %v69
    %301 = vmatprep.subr.mxu0 0.0
    %302 = vmatpush1.msra.mxu0 %v66
    %303 = vmatprep.subr.mxu0 0.0
    %304 = vmatpush1.msra.mxu0 %v63
    %305 = vmatprep.subr.mxu0 0.0
    %306 = vmatpush1.msra.mxu0 %v60
    %307 = vmatprep.subr.mxu0 0.0
    %308 = vmatpush1.msra.mxu0 %v57
    %309 = vmatprep.subr.mxu0 0.0
    %310 = vmatpush1.msra.mxu0 %v54
    %311 = vmatprep.subr.mxu0 0.0
    %312 = vmatpush1.msra.mxu0 %v51
    %313 = vmatprep.subr.mxu0 0.0
    %314 = vmatpush1.msra.mxu0 %v48
    %315 = vmatprep.subr.mxu0 0.0
    %316 = vmatpush1.msra.mxu0 %v45
    %317 = vmatprep.subr.mxu0 0.0
    %318 = vmatpush2.msra.mxu0 0.0
    %319 = vmatprep.subr.mxu0 0.0
    %320 = vmatpush2.msra.mxu0 0.0
    %321 = vmatprep.subr.mxu0 0.0
    %322 = vmatpush2.msra.mxu0 0.0
    %323 = vmatprep.subr.mxu0 0.0
    %324 = vmatpush2.msra.mxu0 0.0
    %325 = vmatprep.subr.mxu0 0.0
    %326 = vmatpush2.msra.mxu0 0.0
    %327 = vmatprep.subr.mxu0 0.0
    %328 = vmatpush2.msra.mxu0 0.0
    %329 = vmatprep.subr.mxu0 0.0
    %330 = vmatpush2.msra.mxu0 0.0
    %331 = vmatprep.subr.mxu0 0.0
    %332 = vmatpush2.msra.mxu0 0.0
    %333 = vmatprep.subr.mxu0 0.0
    %334 = vmatpush2.msra.mxu0 0.0
    %335 = vmatprep.subr.mxu0 0.0
    %336 = vmatpush2.msra.mxu0 0.0
    %337 = vmatprep.subr.mxu0 0.0
    %338 = vmatpush2.msra.mxu0 0.0
    %339 = vmatprep.subr.mxu0 0.0
    %340 = vmatpush2.msra.mxu0 0.0
    %341 = vmatprep.subr.mxu0 0.0
    %342 = vmatpush2.msra.mxu0 0.0
    %343 = vmatprep.subr.mxu0 0.0
    %344 = vmatpush2.msra.mxu0 0.0
    %345 = vmatprep.subr.mxu0 0.0
    %346 = vmatpush2.msra.mxu0 0.0
    %347 = vmatprep.subr.mxu0 0.0
    %348 = vmatpush2.msra.mxu0 0.0
    %349 = vmatprep.mubr.f32.mxu0 0.0
    %350 = vmatmul.mubr.f32.gmra.mxu0 %v91
    %v351 = vpop.f32.mrf.mxu0
    %v352 = vadd.f32 %v120, %v351
    %v353 = vpop.f32.mrf.mxu0
    %354 = vmatprep.mubr.f32.mxu0 0.0
    %355 = vmatmul.mubr.f32.gmra.mxu0 %v92
    %v356 = vpop.f32.mrf.mxu0
    %v357 = vadd.f32 %v120, %v356
    %v358 = vpop.f32.mrf.mxu0
    %359 = vmatprep.mubr.f32.mxu0 0.0
    %360 = vmatmul.mubr.f32.gmra.mxu0 %v93
    %v361 = vpop.f32.mrf.mxu0
    %v362 = vadd.f32 %v120, %v361
    %v363 = vpop.f32.mrf.mxu0
    %364 = vmatprep.mubr.f32.mxu0 0.0
    %365 = vmatmul.mubr.f32.gmra.mxu0 %v94
    %v366 = vpop.f32.mrf.mxu0
    %v367 = vadd.f32 %v120, %v366
    %v368 = vpop.f32.mrf.mxu0
    %369 = vmatprep.mubr.f32.mxu0 0.0
    %370 = vmatmul.mubr.f32.gmra.mxu0 %v95
    %v371 = vpop.f32.mrf.mxu0
    %v372 = vadd.f32 %v120, %v371
    %v373 = vpop.f32.mrf.mxu0
    %374 = vmatprep.mubr.f32.mxu0 0.0
    %375 = vmatmul.mubr.f32.gmra.mxu0 %v96
    %v376 = vpop.f32.mrf.mxu0
    %v377 = vadd.f32 %v120, %v376
    %v378 = vpop.f32.mrf.mxu0
    %379 = vmatprep.mubr.f32.mxu0 0.0
    %380 = vmatmul.mubr.f32.gmra.mxu0 %v97
    %v381 = vpop.f32.mrf.mxu0
    %v382 = vadd.f32 %v120, %v381
    %v383 = vpop.f32.mrf.mxu0
    %384 = vmatprep.mubr.f32.mxu0 0.0
    %385 = vmatmul.mubr.f32.gmra.mxu0 %v98
    %v386 = vpop.f32.mrf.mxu0
    %v387 = vadd.f32 %v120, %v386
    %v388 = vpop.f32.mrf.mxu0
    %389 = vmatprep.mubr.f32.mxu0 0.0
    %390 = vmatmul.mubr.f32.gmra.mxu0 %v99
    %v391 = vpop.f32.mrf.mxu0
    %v392 = vadd.f32 %v120, %v391
    %v393 = vpop.f32.mrf.mxu0
    %394 = vmatprep.mubr.f32.mxu0 0.0
    %395 = vmatmul.mubr.f32.gmra.mxu0 %v100
    %v396 = vpop.f32.mrf.mxu0
    %v397 = vadd.f32 %v120, %v396
    %v398 = vpop.f32.mrf.mxu0
    %399 = vmatprep.mubr.f32.mxu0 0.0
    %400 = vmatmul.mubr.f32.gmra.mxu0 %v101
    %v401 = vpop.f32.mrf.mxu0
    %v402 = vadd.f32 %v120, %v401
    %v403 = vpop.f32.mrf.mxu0
    %404 = vmatprep.mubr.f32.mxu0 0.0
    %405 = vmatmul.mubr.f32.gmra.mxu0 %v102
    %v406 = vpop.f32.mrf.mxu0
    %v407 = vadd.f32 %v120, %v406
    %v408 = vpop.f32.mrf.mxu0
    %409 = vmatprep.mubr.f32.mxu0 0.0
    %410 = vmatmul.mubr.f32.gmra.mxu0 %v103
    %v411 = vpop.f32.mrf.mxu0
    %v412 = vadd.f32 %v120, %v411
    %v413 = vpop.f32.mrf.mxu0
    %414 = vmatprep.mubr.f32.mxu0 0.0
    %415 = vmatmul.mubr.f32.gmra.mxu0 %v104
    %v416 = vpop.f32.mrf.mxu0
    %v417 = vadd.f32 %v120, %v416
    %v418 = vpop.f32.mrf.mxu0
    %419 = vmatprep.mubr.f32.mxu0 0.0
    %420 = vmatmul.mubr.f32.gmra.mxu0 %v105
    %v421 = vpop.f32.mrf.mxu0
    %v422 = vadd.f32 %v120, %v421
    %v423 = vpop.f32.mrf.mxu0
    %424 = vmatprep.mubr.f32.mxu0 0.0
    %425 = vmatmul.mubr.f32.gmra.mxu0 %v106
    %v426 = vpop.f32.mrf.mxu0
    %v427 = vadd.f32 %v120, %v426
    %v428 = vpop.f32.mrf.mxu0
    %429 = vdwg.mxu0
    %430 = vst [vmem:[#allocation7] sm:$0xff] %v191
    %431 = vst [vmem:[#allocation7 + $0x8] sm:$0xff] %v193
    %432 = vst [vmem:[#allocation7 + $0x10] sm:$0xff] %v352
    %433 = vst [vmem:[#allocation7 + $0x18] sm:$0xff] %v197
    %434 = vst [vmem:[#allocation7 + $0x20] sm:$0xff] %v199
    %435 = vst [vmem:[#allocation7 + $0x28] sm:$0xff] %v357
    %436 = vst [vmem:[#allocation7 + $0x30] sm:$0xff] %v203
    %437 = vst [vmem:[#allocation7 + $0x38] sm:$0xff] %v205
    %438 = vst [vmem:[#allocation7 + $0x40] sm:$0xff] %v362
    %439 = vst [vmem:[#allocation7 + $0x48] sm:$0xff] %v209
    %440 = vst [vmem:[#allocation7 + $0x50] sm:$0xff] %v211
    %441 = vst [vmem:[#allocation7 + $0x58] sm:$0xff] %v367
    %442 = vst [vmem:[#allocation7 + $0x60] sm:$0xff] %v215
    %443 = vst [vmem:[#allocation7 + $0x68] sm:$0xff] %v217
    %444 = vst [vmem:[#allocation7 + $0x70] sm:$0xff] %v372
    %445 = vst [vmem:[#allocation7 + $0x78] sm:$0xff] %v221
    %446 = vst [vmem:[#allocation7 + $0x80] sm:$0xff] %v223
    %447 = vst [vmem:[#allocation7 + $0x88] sm:$0xff] %v377
    %448 = vst [vmem:[#allocation7 + $0x90] sm:$0xff] %v227
    %449 = vst [vmem:[#allocation7 + $0x98] sm:$0xff] %v229
    %450 = vst [vmem:[#allocation7 + $0xa0] sm:$0xff] %v382
    %451 = vst [vmem:[#allocation7 + $0xa8] sm:$0xff] %v233
    %452 = vst [vmem:[#allocation7 + $0xb0] sm:$0xff] %v235
    %453 = vst [vmem:[#allocation7 + $0xb8] sm:$0xff] %v387
    %454 = vst [vmem:[#allocation7 + $0xc0] sm:$0xff] %v239
    %455 = vst [vmem:[#allocation7 + $0xc8] sm:$0xff] %v241
    %456 = vst [vmem:[#allocation7 + $0xd0] sm:$0xff] %v392
    %457 = vst [vmem:[#allocation7 + $0xd8] sm:$0xff] %v245
    %458 = vst [vmem:[#allocation7 + $0xe0] sm:$0xff] %v247
    %459 = vst [vmem:[#allocation7 + $0xe8] sm:$0xff] %v397
    %460 = vst [vmem:[#allocation7 + $0xf0] sm:$0xff] %v251
    %461 = vst [vmem:[#allocation7 + $0xf8] sm:$0xff] %v253
    %462 = vst [vmem:[#allocation7 + $0x100] sm:$0xff] %v402
    %463 = vst [vmem:[#allocation7 + $0x108] sm:$0xff] %v257
    %464 = vst [vmem:[#allocation7 + $0x110] sm:$0xff] %v259
    %465 = vst [vmem:[#allocation7 + $0x118] sm:$0xff] %v407
    %466 = vst [vmem:[#allocation7 + $0x120] sm:$0xff] %v263
    %467 = vst [vmem:[#allocation7 + $0x128] sm:$0xff] %v265
    %468 = vst [vmem:[#allocation7 + $0x130] sm:$0xff] %v412
    %469 = vst [vmem:[#allocation7 + $0x138] sm:$0xff] %v269
    %470 = vst [vmem:[#allocation7 + $0x140] sm:$0xff] %v271
    %471 = vst [vmem:[#allocation7 + $0x148] sm:$0xff] %v417
    %472 = vst [vmem:[#allocation7 + $0x150] sm:$0xff] %v275
    %473 = vst [vmem:[#allocation7 + $0x158] sm:$0xff] %v277
    %474 = vst [vmem:[#allocation7 + $0x160] sm:$0xff] %v422
    %475 = vst [vmem:[#allocation7 + $0x168] sm:$0xff] %v281
    %476 = vst [vmem:[#allocation7 + $0x170] sm:$0xff] %v283
    %477 = vst [vmem:[#allocation7 + $0x178] sm:$0xff] %v427
    // Predicated region
    $region22: #{tpu_custom_call.1} parent=1 // pred_check
      _
    $region23: #{tpu_custom_call.1} parent=1 // pred_check_branch
      %479 = sbr.rel (0) target = $region25
    $region24: #{tpu_custom_call.1} parent=1 // pred_region
      %s481 = ssub.s32 6144, 6144
      %482 = vsyncadd [#allocation4], %s481
      %s483 = sshll.u32 [#allocation7], 4
      %s484 = int_to_ptr.vmem [resolvable:$true] %s483
      %489 = dma.vmem_to_hbm [thread:$0]  %s484, 6144, %s3, [#allocation4], 384, 384, 24
    $region25: #{tpu_custom_call.1} parent=1 // pred_fallthru
      _
    // Predicated region
    $region26: #{tpu_custom_call.1} parent=1 // pred_check
      _
    $region27: #{tpu_custom_call.1} parent=1 // pred_check_branch
      %491 = sbr.rel (0) target = $region29
    $region28: #{tpu_custom_call.1} parent=1 // pred_region
      %492 = dma.done [#allocation4], 6144
    $region29: #{tpu_custom_call.1} parent=1 // pred_fallthru
      _
    %493 = vsyncpa [#allocation3], 1
    %494 = vsyncpa [#allocation6], 1
    %495 = vsyncpa [#allocation4], 1

</llo_original>
